<compile_context>
chip_gen: v6e
topology: v6e:2x2x1
jax: 0.10.0
libtpu: 0.0.40
codegen_flags: <defaults>
</compile_context>

<pallas_src>
import functools
from typing import NamedTuple

import jax
import jax.numpy as jnp
from jax.experimental import pallas as pl
from jax.experimental.pallas import tpu as pltpu


def _round_up(x, m):
    return ((x + m - 1) // m) * m


def _round_down(x, m):
    return (x // m) * m


def _cdiv(a, b):
    return (a + b - 1) // b


def _vmem_budget_bytes():
    """Generation-aware VMEM budget: 3/4 of physical VMEM, capped at 100 MiB.

    Falls back to a v7x-safe 48 MiB (3/4 of 64 MiB) if the query is unavailable.
    """
    cap = 64 * 1024 * 1024
    try:
        info = pltpu.get_tpu_info()
        cap = int(getattr(info, "vmem_capacity_bytes", cap)) or cap
    except Exception:
        pass
    return int(min(cap * 3 // 4, 100 * 1024 * 1024))


class _Plan(NamedTuple):
    n_v: int
    n_u: int
    f_in: int
    f_out: int
    n_v_pad: int
    n_u_pad: int
    f_out_pad: int
    tile_m: int
    tile_k: int
    tile_u: int
    nm: int
    nk: int
    vmem_limit: int


def _plan_tiles(n_v, n_u, f_in, f_out, *, tile_m=None, tile_k=None, vmem_budget=None):
    budget = _vmem_budget_bytes() if vmem_budget is None else int(vmem_budget)
    f_out_pad = _round_up(f_out, 128)          # lane-dense (unmasked) output stores

    # --- K (source-node) tiling: keep xw fully grid-resident when it is small ---
    n_u_128 = _round_up(n_u, 128)
    if tile_k is None:
        xw_resident_bytes = 2 * n_u_128 * f_out_pad * 2        # dbl-buffered bf16
        if xw_resident_bytes <= budget // 4:
            tile_k = n_u_128                                    # resident: 1 K step
        else:
            tile_k = max(128, min(2048, _round_down(budget // 4 // (4 * f_out_pad), 128)))
    tile_k = max(128, min(_round_up(int(tile_k), 128), n_u_128))
    nk = _cdiv(n_u_128, tile_k)
    tile_k = _round_up(_cdiv(n_u_128, nk), 128)                 # rebalance -> less padding
    n_u_pad = nk * tile_k

    # --- M (destination-node) tiling: fill the VMEM budget (128-aligned) ---
    n_v_128 = _round_up(n_v, 128)
    if tile_m is None:
        fixed = 2 * tile_k * f_out_pad * 2 + 2 * f_out_pad * 4   # xw + bias (dbl buf)
        per_row = 2 * tile_k * 1 + 2 * f_out_pad * 4             # int8 adj + f32 out (dbl buf)
        tile_m = max(128, min(2048, _round_down(max(budget - fixed, 0) // per_row, 128)))
    tile_m = max(128, min(_round_up(int(tile_m), 128), n_v_128))
    nm = _cdiv(n_v_128, tile_m)
    tile_m = _round_up(_cdiv(n_v_128, nm), 128)
    n_v_pad = nm * tile_m

    # --- Kernel-1 row tiling: reuse the K tiling (divides n_u_pad), shrink if the
    #     projection working set would not fit the budget. ---
    def _k1_bytes(tu):
        return (2 * f_in * f_out_pad * 2      # resident W^T (bf16, dbl-buffered)
                + 2 * tu * f_in * 4           # feat tile (f32)
                + 2 * tu * 4                  # inv-degree tile
                + 2 * tu * f_out_pad * 2)     # xw output tile (bf16)

    tile_u = tile_k
    while tile_u > 128 and _k1_bytes(tile_u) > budget:
        half = tile_u // 2
        tile_u = half if (half % 128 == 0 and tile_k % half == 0) else 128
    # TODO(synk): very large f_in x f_out weights would additionally need an f_out grid
    # axis in the projection kernel; not needed at GCN-typical widths.

    return _Plan(n_v=n_v, n_u=n_u, f_in=f_in, f_out=f_out,
                 n_v_pad=n_v_pad, n_u_pad=n_u_pad, f_out_pad=f_out_pad,
                 tile_m=tile_m, tile_k=tile_k, tile_u=tile_u,
                 nm=nm, nk=nk, vmem_limit=budget)


def _prepare_adjacency(adj, p: _Plan):
    """One-time, cacheable prep: pad + cast adjacency to int8 and build the
    block-sparse K-tile remap (nonzero tiles first, tail repeats the last valid)."""
    # copy_u/sum aggregation uses an unweighted 0/1 adjacency -> int8 is exact.
    adj_i8 = jnp.zeros((p.n_v_pad, p.n_u_pad), jnp.int8).at[:p.n_v, :p.n_u].set(
        adj.astype(jnp.int8))

    blk = adj_i8.astype(jnp.int32).reshape(p.nm, p.tile_m, p.nk, p.tile_k)
    occ = blk.sum(axis=(1, 3)) != 0                              # (nm, nk) nonzero tiles
    kcount = occ.sum(axis=1).astype(jnp.int32)                   # (nm,)
    key = jnp.where(occ, 0, 1).astype(jnp.int32)
    order = jnp.argsort(key, axis=1, stable=True).astype(jnp.int32)   # nonzero tiles first
    last = jnp.take_along_axis(order, jnp.maximum(kcount - 1, 0)[:, None], axis=1)
    t_idx = jnp.arange(p.nk, dtype=jnp.int32)[None, :]
    kmap = jnp.where(t_idx < kcount[:, None], order, last).astype(jnp.int32)
    return adj_i8, kcount, kmap


def _pad2d(x, rows, cols):
    r, c = x.shape
    if r == rows and c == cols:
        return x
    return jnp.zeros((rows, cols), x.dtype).at[:r, :c].set(x)


# ---------------------------------------------------------------------------
# Kernel 1: projection  xw = (feat * inv_deg) @ W^T   (bf16 output, f32 accum)
# ---------------------------------------------------------------------------
def _project_kernel(feat_ref, inv_ref, wt_ref, xw_ref):
    x = feat_ref[...] * inv_ref[...]                       # f32 elementwise (VPU)
    xw_ref[...] = jnp.dot(x.astype(wt_ref.dtype), wt_ref[...],
                          preferred_element_type=jnp.float32).astype(xw_ref.dtype)


# ---------------------------------------------------------------------------
# Kernel 2: aggregation  out = relu(adj @ xw + b)
#   grid = (row tiles of N_V [parallel], remapped K tiles of N_U [arbitrary])
#   adj streamed int8 -> upcast to bf16 at the MXU; accumulate into the resident
#   f32 output block (bias folded into the t==0 init, ReLU in the finalize).
# ---------------------------------------------------------------------------
def _aggregate_kernel(kcount_ref, kmap_ref, adj_ref, xw_ref, b_ref, out_ref, *,
                      use_relu):
    del kmap_ref                                   # only consumed by the index maps
    i = pl.program_id(0)
    t = pl.program_id(1)

    @pl.when(t == 0)
    def _init():
        out_ref[...] = jnp.broadcast_to(b_ref[...], out_ref.shape)

    @pl.when(t < kcount_ref[i])                    # skip all-zero adjacency tiles
    def _accumulate():
        out_ref[...] += jnp.dot(adj_ref[...].astype(xw_ref.dtype), xw_ref[...],
                                preferred_element_type=jnp.float32)

    if use_relu:
        @pl.when(t == pl.num_programs(1) - 1)
        def _finalize():
            out_ref[...] = jnp.maximum(out_ref[...], 0.0)


def _gcn_forward(feat, in_degree, weight, bias, adj_i8, kcount, kmap, p: _Plan,
                 use_relu):
    f32, bf16 = jnp.float32, jnp.bfloat16

    deg = in_degree.reshape(p.n_u, 1).astype(f32)
    inv = jnp.where(deg > 0, 1.0 / jnp.maximum(deg, 1e-30), 0.0)   # guarded reciprocal

    feat_p = _pad2d(feat.astype(f32), p.n_u_pad, p.f_in)
    inv_p = _pad2d(inv, p.n_u_pad, 1)
    wt_p = _pad2d(weight.T.astype(bf16), p.f_in, p.f_out_pad)      # pre-transposed W
    bias_p = _pad2d(bias.reshape(1, p.f_out).astype(f32), 1, p.f_out_pad)

    # ---- kernel 1: xw = (feat * inv_deg) @ W^T --------------------------------
    xw = pl.pallas_call(
        _project_kernel,
        out_shape=jax.ShapeDtypeStruct((p.n_u_pad, p.f_out_pad), bf16),
        grid_spec=pltpu.PrefetchScalarGridSpec(
            num_scalar_prefetch=0,
            grid=(p.n_u_pad // p.tile_u,),
            in_specs=[
                pl.BlockSpec((p.tile_u, p.f_in), lambda i: (i, 0)),
                pl.BlockSpec((p.tile_u, 1), lambda i: (i, 0)),
                pl.BlockSpec((p.f_in, p.f_out_pad), lambda i: (0, 0)),
            ],
            out_specs=pl.BlockSpec((p.tile_u, p.f_out_pad), lambda i: (i, 0)),
        ),
        compiler_params=pltpu.CompilerParams(
            dimension_semantics=("parallel",),
            vmem_limit_bytes=p.vmem_limit),
    )(feat_p, inv_p, wt_p)

    # ---- kernel 2: out = relu(adj @ xw + b), block-sparse over K tiles --------
    kernel = functools.partial(_aggregate_kernel, use_relu=use_relu)
    out = pl.pallas_call(
        kernel,
        out_shape=jax.ShapeDtypeStruct((p.n_v_pad, p.f_out_pad), f32),
        grid_spec=pltpu.PrefetchScalarGridSpec(
            num_scalar_prefetch=2,                 # kcount, kmap -> SMEM
            grid=(p.nm, p.nk),
            in_specs=[
                pl.BlockSpec((p.tile_m, p.tile_k),
                             lambda i, t, kc, km: (i, km[i, t])),
                pl.BlockSpec((p.tile_k, p.f_out_pad),
                             lambda i, t, kc, km: (km[i, t], 0)),
                pl.BlockSpec((1, p.f_out_pad),
                             lambda i, t, kc, km: (0, 0)),
            ],
            out_specs=pl.BlockSpec((p.tile_m, p.f_out_pad),
                                   lambda i, t, kc, km: (i, 0)),
        ),
        compiler_params=pltpu.CompilerParams(
            dimension_semantics=("parallel", "arbitrary"),
            vmem_limit_bytes=p.vmem_limit),
    )(kcount, kmap, adj_i8, xw, bias_p)

    return out[:p.n_v, :p.f_out]


def make_gcn_layer(adj, in_feats, out_feats, *, activation_relu=False,
                   tile_m=None, tile_k=None, vmem_budget=None):
    """One-time graph preparation (tile plan, int8-padded adjacency, block-sparse
    K-tile remap). Returns apply(feat, in_degree, weight, bias) -> [N_V, out_feats]."""
    n_v, n_u = adj.shape
    plan = _plan_tiles(n_v, n_u, in_feats, out_feats,
                       tile_m=tile_m, tile_k=tile_k, vmem_budget=vmem_budget)
    adj_i8, kcount, kmap = _prepare_adjacency(adj, plan)

    def apply(feat, in_degree, weight, bias):
        return _gcn_forward(feat, in_degree, weight, bias,
                            adj_i8, kcount, kmap, plan, activation_relu)

    return apply


def gcn_layer_ref(feat, in_degree, adj, weight, bias, *, activation_relu=False,
                  matmul_dtype=jnp.float32):
    """Pure-JAX reference. With matmul_dtype=bf16 it mirrors the kernel's casts."""
    deg = in_degree.reshape(-1, 1).astype(jnp.float32)
    inv = jnp.where(deg > 0, 1.0 / jnp.maximum(deg, 1e-30), 0.0)
    x = (feat.astype(jnp.float32) * inv).astype(matmul_dtype)
    xw = jnp.dot(x, weight.T.astype(matmul_dtype),
                 preferred_element_type=jnp.float32).astype(matmul_dtype)
    h = jnp.dot(adj.astype(matmul_dtype), xw, preferred_element_type=jnp.float32)
    y = h + bias.reshape(1, -1).astype(jnp.float32)
    if activation_relu:
        y = jnp.maximum(y, 0.0)
    return y


def _check(out, feat, in_degree, adj, weight, bias, relu):
    ref16 = gcn_layer_ref(feat, in_degree, adj, weight, bias,
                          activation_relu=relu, matmul_dtype=jnp.bfloat16)
    ref32 = gcn_layer_ref(feat, in_degree, adj, weight, bias,
                          activation_relu=relu, matmul_dtype=jnp.float32)
    assert out.shape == ref32.shape, (out.shape, ref32.shape)
    assert jnp.allclose(out, ref16, atol=5e-3, rtol=5e-3), "mismatch vs matched bf16 ref"
    assert jnp.allclose(out, ref32, atol=5e-2, rtol=5e-2), "mismatch vs f32 ref"


if __name__ == "__main__":
    key = jax.random.PRNGKey(0)
    k1, k2, k3, k4 = jax.random.split(key, 4)

    # --- Case A: small graph, module-faithful constant-1 Linear init, auto tiles ---
    N_U, N_V, F_IN, F_OUT = 64, 64, 32, 16
    feat = jax.random.normal(k1, (N_U, F_IN), dtype=jnp.float32)
    adj = (jax.random.uniform(k2, (N_V, N_U)) < 0.25).astype(jnp.float32)
    in_degree = jnp.maximum(adj.sum(axis=0), 1.0)                 # (N_U,)
    weight = jnp.ones((F_OUT, F_IN), jnp.float32)                 # init.constant_(weight, 1)
    bias = jnp.ones((F_OUT,), jnp.float32)                        # init.constant_(bias, 1)

    layer_a = make_gcn_layer(adj, F_IN, F_OUT, activation_relu=True)
    out_a = jax.block_until_ready(layer_a(feat, in_degree, weight, bias))
    _check(out_a, feat, in_degree, adj, weight, bias, True)

    # Reuse the cached (int8, block-sparse) adjacency for a second call.
    out_a2 = jax.block_until_ready(layer_a(2.0 * feat, in_degree, weight, bias))
    _check(out_a2, 2.0 * feat, in_degree, adj, weight, bias, True)

    # --- Case B: multi-tile + block-sparse path (forced small tiles), zero degrees ---
    N_U, N_V, F_IN, F_OUT = 512, 384, 64, 48
    feat = jax.random.normal(k3, (N_U, F_IN), dtype=jnp.float32)
    adj = (jax.random.uniform(k4, (N_V, N_U)) < 0.05).astype(jnp.float32)
    adj = adj.at[:, 256:384].set(0.0)            # an all-zero K tile -> DMA/MXU skipped
    in_degree = adj.sum(axis=0)                  # contains zeros -> guarded reciprocal
    weight = 0.1 * jax.random.normal(jax.random.PRNGKey(7), (F_OUT, F_IN), jnp.float32)
    bias = jax.random.normal(jax.random.PRNGKey(8), (F_OUT,), jnp.float32)

    layer_b = make_gcn_layer(adj, F_IN, F_OUT, activation_relu=True,
                             tile_m=128, tile_k=128)
    out_b = jax.block_until_ready(layer_b(feat, in_degree, weight, bias))
    _check(out_b, feat, in_degree, adj, weight, bias, True)

    print("KERNEL_OK")
</pallas_src>

<mosaic_0001>
module attributes {stable_mosaic.version = 11 : i64} {
  func.func @_project_kernel(%arg0: i32, %arg1: memref<128x32xf32, #tpu.memory_space<vmem>>, %arg2: memref<128x1xf32, #tpu.memory_space<vmem>>, %arg3: memref<32x128xbf16, #tpu.memory_space<vmem>>, %arg4: memref<128x128xbf16, #tpu.memory_space<vmem>>) attributes {dimension_semantics = [#tpu.dimension_semantics<parallel>], iteration_bounds = array<i64: 1>, scalar_prefetch = 0 : i64, scratch_operands = 0 : i64, tpu.core_type = #tpu.core_type<tc>, window_params = [{transform_indices = @transform_0, window_bounds = array<i64: 128, 32>}, {transform_indices = @transform_1, window_bounds = array<i64: 128, 1>}, {pipeline_mode = #tpu.pipeline_mode<synchronous>, transform_indices = @transform_2, window_bounds = array<i64: 32, 128>}, {transform_indices = @transform_3, window_bounds = array<i64: 128, 128>}]} {
    %c0 = arith.constant 0 : index
    %c0_0 = arith.constant 0 : index
    %0 = vector.load %arg1[%c0, %c0_0] : memref<128x32xf32, #tpu.memory_space<vmem>>, vector<128x32xf32>
    %c0_1 = arith.constant 0 : index
    %c0_2 = arith.constant 0 : index
    %1 = vector.load %arg2[%c0_1, %c0_2] : memref<128x1xf32, #tpu.memory_space<vmem>>, vector<128x1xf32>
    %2 = vector.broadcast %1 : vector<128x1xf32> to vector<128x32xf32>
    %3 = arith.mulf %0, %2 : vector<128x32xf32>
    %4 = arith.truncf %3 : vector<128x32xf32> to vector<128x32xbf16>
    %c0_3 = arith.constant 0 : index
    %c0_4 = arith.constant 0 : index
    %5 = vector.load %arg3[%c0_3, %c0_4] : memref<32x128xbf16, #tpu.memory_space<vmem>>, vector<32x128xbf16>
    %cst = arith.constant dense<0.000000e+00> : vector<128x128xf32>
    %6 = tpu.matmul %4, %5, %cst {dimension_numbers = #tpu.dot_dimension_numbers<[1], [0], [0], [1], [0, 0, 1, 1], [], []>} : vector<128x32xbf16>, vector<32x128xbf16>, vector<128x128xf32> -> vector<128x128xf32>
    %7 = arith.truncf %6 : vector<128x128xf32> to vector<128x128xbf16>
    %c0_5 = arith.constant 0 : index
    %c0_6 = arith.constant 0 : index
    %8 = vector.load %arg4[%c0_5, %c0_6] : memref<128x128xbf16, #tpu.memory_space<vmem>>, vector<128x128xbf16>
    tpu.vector_store %arg4[%c0_5, %c0_6], %7 {strides = array<i32>} : memref<128x128xbf16, #tpu.memory_space<vmem>>, vector<128x128xbf16>,
    return
  }
  func.func @transform_0(%arg0: i32) -> (i32, i32) {
    %c0_i32 = arith.constant 0 : i32
    %c0_i32_0 = arith.constant 0 : i32
    return %arg0, %c0_i32 : i32, i32
  }
  func.func @transform_1(%arg0: i32) -> (i32, i32) {
    %c0_i32 = arith.constant 0 : i32
    %c0_i32_0 = arith.constant 0 : i32
    return %arg0, %c0_i32 : i32, i32
  }
  func.func @transform_2(%arg0: i32) -> (i32, i32) {
    %c0_i32 = arith.constant 0 : i32
    %c0_i32_0 = arith.constant 0 : i32
    %c0_i32_1 = arith.constant 0 : i32
    return %c0_i32, %c0_i32_0 : i32, i32
  }
  func.func @transform_3(%arg0: i32) -> (i32, i32) {
    %c0_i32 = arith.constant 0 : i32
    %c0_i32_0 = arith.constant 0 : i32
    return %arg0, %c0_i32 : i32, i32
  }
}

</mosaic_0001>

<llo_original>
// kernel: tpu_custom_call.1
$region0: #{tpu_custom_call.1}
  #allocation0 [shape = 'u32[]', space=smem, size = 0x4, offset = 0x4, fixed_abs, tag = 'smem constant byte address 0x4 - core index']
  #allocation1 [shape = 'u32[144,128]{1,0:T(1,128)}', space=vmem, size = 0x12000, scoped, tag = 'internal scratch']
  %s0 = inlined_call_operand.vmem [shape: f32[128,32], index: 0, kind: input, shape index: {}]
  %s1 = inlined_call_operand.vmem [shape: f32[128,1], index: 1, kind: input, shape index: {}]
  %s2 = inlined_call_operand.vmem [shape: bf16[32,128], index: 2, kind: input, shape index: {}]
  %s3 = inlined_call_operand.hbm [shape: bf16[128,128], index: 3, kind: output, shape index: {}]
  %s4 = sld [smem:[#allocation0]]
  $region22: #{tpu_custom_call.1} parent=0
    _
  %s6 = ssub.s32 1, %s4
  %s7 = scalar_select 0, %s6, %s4
  $region1: #{tpu_custom_call.1} parent=0
    #allocation2 [shape = 'u8[32768]{0}', space=vmem, size = 0x8000, scoped, tag = 'output window, operand 0, single buffered']
    #allocation3 [shape = 's32[1]{0}', space=sflag, size = 0x4, scoped, tag = 'scoped memory for tpu_custom_call.1']
    %8 = vsyncpa [#allocation3], 0
    // Predicated region
    $region2: #{tpu_custom_call.1} parent=1 // pred_check
      _
    $region3: #{tpu_custom_call.1} parent=1 // pred_check_branch
      %10 = sbr.rel (0) target = $region5
    $region4: #{tpu_custom_call.1} parent=1 // pred_region
      _
    $region5: #{tpu_custom_call.1} parent=1 // pred_fallthru
      _
    // Predicated region
    $region6: #{tpu_custom_call.1} parent=1 // pred_check
      _
    $region7: #{tpu_custom_call.1} parent=1 // pred_check_branch
      %12 = sbr.rel (0) target = $region9
    $region8: #{tpu_custom_call.1} parent=1 // pred_region
      _
    $region9: #{tpu_custom_call.1} parent=1 // pred_fallthru
      _
    // Predicated region
    $region10: #{tpu_custom_call.1} parent=1 // pred_check
      _
    $region11: #{tpu_custom_call.1} parent=1 // pred_check_branch
      %14 = sbr.rel (0) target = $region13
    $region12: #{tpu_custom_call.1} parent=1 // pred_region
      _
    $region13: #{tpu_custom_call.1} parent=1 // pred_fallthru
      _
    %v16 = vld [vmem:[%s0] sm:$0xff]
    %v17 = vld [vmem:[%s0 + $0x8] sm:$0xff]
    %v18 = vld [vmem:[%s0 + $0x10] sm:$0xff]
    %v19 = vld [vmem:[%s0 + $0x18] sm:$0xff]
    %v20 = vld [vmem:[%s0 + $0x20] sm:$0xff]
    %v21 = vld [vmem:[%s0 + $0x28] sm:$0xff]
    %v22 = vld [vmem:[%s0 + $0x30] sm:$0xff]
    %v23 = vld [vmem:[%s0 + $0x38] sm:$0xff]
    %v24 = vld [vmem:[%s0 + $0x40] sm:$0xff]
    %v25 = vld [vmem:[%s0 + $0x48] sm:$0xff]
    %v26 = vld [vmem:[%s0 + $0x50] sm:$0xff]
    %v27 = vld [vmem:[%s0 + $0x58] sm:$0xff]
    %v28 = vld [vmem:[%s0 + $0x60] sm:$0xff]
    %v29 = vld [vmem:[%s0 + $0x68] sm:$0xff]
    %v30 = vld [vmem:[%s0 + $0x70] sm:$0xff]
    %v31 = vld [vmem:[%s0 + $0x78] sm:$0xff]
    %v32 = vld [vmem:[%s1] sm:$0xff]
    %v33 = vld [vmem:[%s1 + $0x8] sm:$0xff]
    %v34 = vld [vmem:[%s1 + $0x10] sm:$0xff]
    %v35 = vld [vmem:[%s1 + $0x18] sm:$0xff]
    %v36 = vld [vmem:[%s1 + $0x20] sm:$0xff]
    %v37 = vld [vmem:[%s1 + $0x28] sm:$0xff]
    %v38 = vld [vmem:[%s1 + $0x30] sm:$0xff]
    %v39 = vld [vmem:[%s1 + $0x38] sm:$0xff]
    %v40 = vld [vmem:[%s1 + $0x40] sm:$0xff]
    %v41 = vld [vmem:[%s1 + $0x48] sm:$0xff]
    %v42 = vld [vmem:[%s1 + $0x50] sm:$0xff]
    %v43 = vld [vmem:[%s1 + $0x58] sm:$0xff]
    %v44 = vld [vmem:[%s1 + $0x60] sm:$0xff]
    %v45 = vld [vmem:[%s1 + $0x68] sm:$0xff]
    %v46 = vld [vmem:[%s1 + $0x70] sm:$0xff]
    %v47 = vld [vmem:[%s1 + $0x78] sm:$0xff]
    %49 = vset.pattern.permute.xlu0 0
    %50 = vperm.xlu0 %49, %v32
    %v51 = vpop.permute.xlu0 %50
    %54 = vset.pattern.permute.xlu0 0
    %55 = vperm.xlu0 %54, %v33
    %v56 = vpop.permute.xlu0 %55
    %59 = vset.pattern.permute.xlu0 0
    %60 = vperm.xlu0 %59, %v34
    %v61 = vpop.permute.xlu0 %60
    %64 = vset.pattern.permute.xlu0 0
    %65 = vperm.xlu0 %64, %v35
    %v66 = vpop.permute.xlu0 %65
    %69 = vset.pattern.permute.xlu0 0
    %70 = vperm.xlu0 %69, %v36
    %v71 = vpop.permute.xlu0 %70
    %74 = vset.pattern.permute.xlu0 0
    %75 = vperm.xlu0 %74, %v37
    %v76 = vpop.permute.xlu0 %75
    %79 = vset.pattern.permute.xlu0 0
    %80 = vperm.xlu0 %79, %v38
    %v81 = vpop.permute.xlu0 %80
    %84 = vset.pattern.permute.xlu0 0
    %85 = vperm.xlu0 %84, %v39
    %v86 = vpop.permute.xlu0 %85
    %89 = vset.pattern.permute.xlu0 0
    %90 = vperm.xlu0 %89, %v40
    %v91 = vpop.permute.xlu0 %90
    %94 = vset.pattern.permute.xlu0 0
    %95 = vperm.xlu0 %94, %v41
    %v96 = vpop.permute.xlu0 %95
    %99 = vset.pattern.permute.xlu0 0
    %100 = vperm.xlu0 %99, %v42
    %v101 = vpop.permute.xlu0 %100
    %104 = vset.pattern.permute.xlu0 0
    %105 = vperm.xlu0 %104, %v43
    %v106 = vpop.permute.xlu0 %105
    %109 = vset.pattern.permute.xlu0 0
    %110 = vperm.xlu0 %109, %v44
    %v111 = vpop.permute.xlu0 %110
    %114 = vset.pattern.permute.xlu0 0
    %115 = vperm.xlu0 %114, %v45
    %v116 = vpop.permute.xlu0 %115
    %119 = vset.pattern.permute.xlu0 0
    %120 = vperm.xlu0 %119, %v46
    %v121 = vpop.permute.xlu0 %120
    %124 = vset.pattern.permute.xlu0 0
    %125 = vperm.xlu0 %124, %v47
    %v126 = vpop.permute.xlu0 %125
    %v128 = vmul.f32 %v16, %v51
    %v129 = vmul.f32 %v17, %v56
    %v130 = vmul.f32 %v18, %v61
    %v131 = vmul.f32 %v19, %v66
    %v132 = vmul.f32 %v20, %v71
    %v133 = vmul.f32 %v21, %v76
    %v134 = vmul.f32 %v22, %v81
    %v135 = vmul.f32 %v23, %v86
    %v136 = vmul.f32 %v24, %v91
    %v137 = vmul.f32 %v25, %v96
    %v138 = vmul.f32 %v26, %v101
    %v139 = vmul.f32 %v27, %v106
    %v140 = vmul.f32 %v28, %v111
    %v141 = vmul.f32 %v29, %v116
    %v142 = vmul.f32 %v30, %v121
    %v143 = vmul.f32 %v31, %v126
    %v144 = vpack.c.bf16 %v129, %v128
    %v145 = vpack.c.bf16 %v131, %v130
    %v146 = vpack.c.bf16 %v133, %v132
    %v147 = vpack.c.bf16 %v135, %v134
    %v148 = vpack.c.bf16 %v137, %v136
    %v149 = vpack.c.bf16 %v139, %v138
    %v150 = vpack.c.bf16 %v141, %v140
    %v151 = vpack.c.bf16 %v143, %v142
    %v152 = vld [vmem:[%s2] sm:$0xf]
    %v153 = vld [vmem:[%s2 + $0x4] sm:$0xf]
    %v154 = vld [vmem:[%s2 + $0x8] sm:$0xf]
    %v155 = vld [vmem:[%s2 + $0xc] sm:$0xf]
    %v160 = vunpack.c.l.b16 %v152
    %v161 = vunpack.c.l.b16 %v153
    %v162 = vunpack.c.l.b16 %v154
    %v163 = vunpack.c.l.b16 %v155
    %v164 = vpack.c.b16 %v161, %v160
    %v165 = vpack.c.b16 %v163, %v162
    %vm168 = vcmask 261120
    %v170 = vsel %vm168, %v144, 0
    %v173 = vsel %vm168, %v145, 0
    %v176 = vsel %vm168, %v146, 0
    %v179 = vsel %vm168, %v147, 0
    %v182 = vsel %vm168, %v148, 0
    %v185 = vsel %vm168, %v149, 0
    %v188 = vsel %vm168, %v150, 0
    %v191 = vsel %vm168, %v151, 0
    %193 = vmatprep.subr.bf16.mxu0 0
    %194 = vmatpush1.bf16.msra.mxu0 0
    %195 = vmatprep.subr.bf16.mxu0 0
    %196 = vmatpush1.bf16.msra.mxu0 0
    %197 = vmatprep.subr.bf16.mxu0 0
    %198 = vmatpush1.bf16.msra.mxu0 0
    %199 = vmatprep.subr.bf16.mxu0 0
    %200 = vmatpush1.bf16.msra.mxu0 0
    %201 = vmatprep.subr.bf16.mxu0 0
    %202 = vmatpush1.bf16.msra.mxu0 0
    %203 = vmatprep.subr.bf16.mxu0 0
    %204 = vmatpush1.bf16.msra.mxu0 0
    %205 = vmatprep.subr.bf16.mxu0 0
    %206 = vmatpush1.bf16.msra.mxu0 %v165
    %207 = vmatprep.subr.bf16.mxu0 0
    %208 = vmatpush1.bf16.msra.mxu0 %v164
    %209 = vmatprep.subr.bf16.mxu0 0
    %210 = vmatpush2.bf16.msra.mxu0 0
    %211 = vmatprep.subr.bf16.mxu0 0
    %212 = vmatpush2.bf16.msra.mxu0 0
    %213 = vmatprep.subr.bf16.mxu0 0
    %214 = vmatpush2.bf16.msra.mxu0 0
    %215 = vmatprep.subr.bf16.mxu0 0
    %216 = vmatpush2.bf16.msra.mxu0 0
    %217 = vmatprep.subr.bf16.mxu0 0
    %218 = vmatpush2.bf16.msra.mxu0 0
    %219 = vmatprep.subr.bf16.mxu0 0
    %220 = vmatpush2.bf16.msra.mxu0 0
    %221 = vmatprep.subr.bf16.mxu0 0
    %222 = vmatpush2.bf16.msra.mxu0 0
    %223 = vmatprep.subr.bf16.mxu0 0
    %224 = vmatpush2.bf16.msra.mxu0 0
    %225 = vmatprep.mubr.bf16.mxu0 0
    %226 = vmatmul.mubr.bf16.gmra.mxu0 %v170
    %v227 = vpop.f32.mrf.mxu0
    %v228 = vadd.f32 0.0, %v227
    %v229 = vpop.f32.mrf.mxu0
    %v230 = vpop.f32.mrf.mxu0
    %v231 = vadd.f32 0.0, %v230
    %v232 = vpop.f32.mrf.mxu0
    %233 = vmatprep.mubr.bf16.mxu0 0
    %234 = vmatmul.mubr.bf16.gmra.mxu0 %v173
    %v235 = vpop.f32.mrf.mxu0
    %v236 = vadd.f32 0.0, %v235
    %v237 = vpop.f32.mrf.mxu0
    %v238 = vpop.f32.mrf.mxu0
    %v239 = vadd.f32 0.0, %v238
    %v240 = vpop.f32.mrf.mxu0
    %241 = vmatprep.mubr.bf16.mxu0 0
    %242 = vmatmul.mubr.bf16.gmra.mxu0 %v176
    %v243 = vpop.f32.mrf.mxu0
    %v244 = vadd.f32 0.0, %v243
    %v245 = vpop.f32.mrf.mxu0
    %v246 = vpop.f32.mrf.mxu0
    %v247 = vadd.f32 0.0, %v246
    %v248 = vpop.f32.mrf.mxu0
    %249 = vmatprep.mubr.bf16.mxu0 0
    %250 = vmatmul.mubr.bf16.gmra.mxu0 %v179
    %v251 = vpop.f32.mrf.mxu0
    %v252 = vadd.f32 0.0, %v251
    %v253 = vpop.f32.mrf.mxu0
    %v254 = vpop.f32.mrf.mxu0
    %v255 = vadd.f32 0.0, %v254
    %v256 = vpop.f32.mrf.mxu0
    %257 = vmatprep.mubr.bf16.mxu0 0
    %258 = vmatmul.mubr.bf16.gmra.mxu0 %v182
    %v259 = vpop.f32.mrf.mxu0
    %v260 = vadd.f32 0.0, %v259
    %v261 = vpop.f32.mrf.mxu0
    %v262 = vpop.f32.mrf.mxu0
    %v263 = vadd.f32 0.0, %v262
    %v264 = vpop.f32.mrf.mxu0
    %265 = vmatprep.mubr.bf16.mxu0 0
    %266 = vmatmul.mubr.bf16.gmra.mxu0 %v185
    %v267 = vpop.f32.mrf.mxu0
    %v268 = vadd.f32 0.0, %v267
    %v269 = vpop.f32.mrf.mxu0
    %v270 = vpop.f32.mrf.mxu0
    %v271 = vadd.f32 0.0, %v270
    %v272 = vpop.f32.mrf.mxu0
    %273 = vmatprep.mubr.bf16.mxu0 0
    %274 = vmatmul.mubr.bf16.gmra.mxu0 %v188
    %v275 = vpop.f32.mrf.mxu0
    %v276 = vadd.f32 0.0, %v275
    %v277 = vpop.f32.mrf.mxu0
    %v278 = vpop.f32.mrf.mxu0
    %v279 = vadd.f32 0.0, %v278
    %v280 = vpop.f32.mrf.mxu0
    %281 = vmatprep.mubr.bf16.mxu0 0
    %282 = vmatmul.mubr.bf16.gmra.mxu0 %v191
    %v283 = vpop.f32.mrf.mxu0
    %v284 = vadd.f32 0.0, %v283
    %v285 = vpop.f32.mrf.mxu0
    %v286 = vpop.f32.mrf.mxu0
    %v287 = vadd.f32 0.0, %v286
    %v288 = vpop.f32.mrf.mxu0
    %289 = vdwg.mxu0
    %v290 = vpack.c.bf16 %v231, %v228
    %v291 = vpack.c.bf16 %v239, %v236
    %v292 = vpack.c.bf16 %v247, %v244
    %v293 = vpack.c.bf16 %v255, %v252
    %v294 = vpack.c.bf16 %v263, %v260
    %v295 = vpack.c.bf16 %v271, %v268
    %v296 = vpack.c.bf16 %v279, %v276
    %v297 = vpack.c.bf16 %v287, %v284
    %v306 = vunpack.c.l.b16 %v290
    %v307 = vunpack.c.h.b16 %v290
    %v308 = vunpack.c.l.b16 %v291
    %v309 = vunpack.c.h.b16 %v291
    %v310 = vunpack.c.l.b16 %v292
    %v311 = vunpack.c.h.b16 %v292
    %v312 = vunpack.c.l.b16 %v293
    %v313 = vunpack.c.h.b16 %v293
    %v314 = vunpack.c.l.b16 %v294
    %v315 = vunpack.c.h.b16 %v294
    %v316 = vunpack.c.l.b16 %v295
    %v317 = vunpack.c.h.b16 %v295
    %v318 = vunpack.c.l.b16 %v296
    %v319 = vunpack.c.h.b16 %v296
    %v320 = vunpack.c.l.b16 %v297
    %v321 = vunpack.c.h.b16 %v297
    %v322 = vpack.c.b16 %v306, %v306
    %v323 = vpack.c.b16 %v307, %v307
    %v324 = vpack.c.b16 %v308, %v308
    %v325 = vpack.c.b16 %v309, %v309
    %v326 = vpack.c.b16 %v310, %v310
    %v327 = vpack.c.b16 %v311, %v311
    %v328 = vpack.c.b16 %v312, %v312
    %v329 = vpack.c.b16 %v313, %v313
    %v330 = vpack.c.b16 %v314, %v314
    %v331 = vpack.c.b16 %v315, %v315
    %v332 = vpack.c.b16 %v316, %v316
    %v333 = vpack.c.b16 %v317, %v317
    %v334 = vpack.c.b16 %v318, %v318
    %v335 = vpack.c.b16 %v319, %v319
    %v336 = vpack.c.b16 %v320, %v320
    %v337 = vpack.c.b16 %v321, %v321
    %354 = vst [vmem:[#allocation2] sm:$0xf] %v322
    %355 = vst [vmem:[#allocation2 + $0x4] sm:$0xf] %v323
    %356 = vst [vmem:[#allocation2 + $0x8] sm:$0xf] %v324
    %357 = vst [vmem:[#allocation2 + $0xc] sm:$0xf] %v325
    %358 = vst [vmem:[#allocation2 + $0x10] sm:$0xf] %v326
    %359 = vst [vmem:[#allocation2 + $0x14] sm:$0xf] %v327
    %360 = vst [vmem:[#allocation2 + $0x18] sm:$0xf] %v328
    %361 = vst [vmem:[#allocation2 + $0x1c] sm:$0xf] %v329
    %362 = vst [vmem:[#allocation2 + $0x20] sm:$0xf] %v330
    %363 = vst [vmem:[#allocation2 + $0x24] sm:$0xf] %v331
    %364 = vst [vmem:[#allocation2 + $0x28] sm:$0xf] %v332
    %365 = vst [vmem:[#allocation2 + $0x2c] sm:$0xf] %v333
    %366 = vst [vmem:[#allocation2 + $0x30] sm:$0xf] %v334
    %367 = vst [vmem:[#allocation2 + $0x34] sm:$0xf] %v335
    %368 = vst [vmem:[#allocation2 + $0x38] sm:$0xf] %v336
    %369 = vst [vmem:[#allocation2 + $0x3c] sm:$0xf] %v337
    // Predicated region
    $region14: #{tpu_custom_call.1} parent=1 // pred_check
      _
    $region15: #{tpu_custom_call.1} parent=1 // pred_check_branch
      %371 = sbr.rel (0) target = $region17
    $region16: #{tpu_custom_call.1} parent=1 // pred_region
      %s373 = ssub.s32 1024, 1024
      %374 = vsyncadd [#allocation3], %s373
      %s375 = sshll.u32 [#allocation2], 4
      %s376 = int_to_ptr.vmem [resolvable:$true] %s375
      %381 = dma.vmem_to_hbm [thread:$0]  %s376, 1024, %s3, [#allocation3], 64, 64, 4
    $region17: #{tpu_custom_call.1} parent=1 // pred_fallthru
      _
    // Predicated region
    $region18: #{tpu_custom_call.1} parent=1 // pred_check
      _
    $region19: #{tpu_custom_call.1} parent=1 // pred_check_branch
      %383 = sbr.rel (0) target = $region21
    $region20: #{tpu_custom_call.1} parent=1 // pred_region
      %384 = dma.done [#allocation3], 1024
    $region21: #{tpu_custom_call.1} parent=1 // pred_fallthru
      _
    %385 = vsyncpa [#allocation3], 1

</llo_original>
